<compile_context>
chip_gen: v7x
topology: tpu7x:2x2x1
jax: 0.10.0
libtpu: 0.0.40
codegen_flags: <defaults>
</compile_context>

<pallas_src>
import jax
import jax.numpy as jnp
from jax.experimental import pallas as pl
from jax.experimental.pallas import tpu as pltpu


_LANE_CANDIDATES = (2048, 1024, 512, 256, 128)


def _make_lambda_kernel(fn):
    """Pallas kernel body applying `fn` tile-wise (elementwise semantics)."""

    def kernel(x_ref, o_ref):
        o_ref[...] = fn(x_ref[...]).astype(o_ref.dtype)

    return kernel


def lambda_pallas(fn, *, target_block_bytes=2 * 1024 * 1024):
    """Lift an elementwise, JAX-traceable `fn` into a Pallas TPU kernel.

    Equivalent to torchlayers.Lambda(fn): out = fn(x). Only shape-preserving
    (elementwise) callables are kernelized.
    """
    kernel = _make_lambda_kernel(fn)

    def apply(x):
        orig_shape = x.shape
        n = x.size
        in_itemsize = jnp.dtype(x.dtype).itemsize
        # dtype-aware minimum sublane tile (f32: 8, bf16: 16, int8/fp8: 32)
        sub_min = max(8, 32 // in_itemsize)

        # fn may change dtype (comparisons, casts) -> take it from eval_shape.
        out_struct = jax.eval_shape(fn, jax.ShapeDtypeStruct(orig_shape, x.dtype))
        if out_struct.shape != tuple(orig_shape):
            # TODO(synk): reductions / shape-changing callables have no generic
            # tile-wise Pallas lowering here; only elementwise fns supported.
            raise ValueError("lambda_pallas only supports elementwise functions")
        out_dtype = out_struct.dtype

        flat = x.reshape(-1)

        # Pick the widest lane-dense layout that divides n exactly so no
        # wrapper-side padding copy is needed in the common case.
        lane = next((c for c in _LANE_CANDIDATES if n % c == 0), None)
        if lane is None:
            # Awkward size: pad once up to a multiple of 128 lanes (rare path).
            lane = 128
            n_pad = pl.cdiv(n, lane) * lane
            flat = jnp.pad(flat, (0, n_pad - n))
        else:
            n_pad = n

        rows = n_pad // lane
        row_bytes = lane * max(in_itemsize, jnp.dtype(out_dtype).itemsize)
        target_rows = max(sub_min, target_block_bytes // row_bytes)
        target_rows = (target_rows // sub_min) * sub_min  # multiple of sub_min

        if rows <= target_rows:
            # Single block == full array dims (always a legal block shape,
            # even when rows is not a multiple of 8).
            tile_rows = rows
            grid = (1,)
        else:
            # Multi-MiB lane-dense tiles; ragged last block handled by Pallas.
            tile_rows = target_rows
            grid = (pl.cdiv(rows, tile_rows),)

        out2d = pl.pallas_call(
            kernel,
            out_shape=jax.ShapeDtypeStruct((rows, lane), out_dtype),
            grid=grid,
            in_specs=[pl.BlockSpec((tile_rows, lane), lambda i: (i, 0))],
            out_specs=pl.BlockSpec((tile_rows, lane), lambda i: (i, 0)),
            compiler_params=pltpu.CompilerParams(
                dimension_semantics=("parallel",),
                vmem_limit_bytes=32 * 1024 * 1024,
            ),
        )(flat.reshape(rows, lane))

        out_flat = out2d.reshape(-1)
        if n_pad != n:
            out_flat = out_flat[:n]
        return out_flat.reshape(orig_shape)

    return jax.jit(apply)


if __name__ == "__main__":
    # The user-specified function wrapped by Lambda (JAX-traceable, elementwise).
    fn = lambda x: jnp.maximum(x, 0.0) * 2.0 + 1.0

    lambda_module = lambda_pallas(fn)

    key = jax.random.PRNGKey(0)
    x = jax.random.normal(key, (2, 4, 16, 16), dtype=jnp.float32)  # NCHW

    out = jax.block_until_ready(lambda_module(x))

    # Reference check against plain JAX application of the same function.
    ref = fn(x)
    assert out.shape == x.shape
    assert out.dtype == ref.dtype
    assert jnp.allclose(out, ref, atol=1e-6, rtol=1e-6)

    # Second shape (ragged row count, exercises cdiv grid + multi-block path).
    y = jax.random.normal(jax.random.PRNGKey(1), (3, 5, 7, 11), dtype=jnp.float32)
    out_y = jax.block_until_ready(lambda_module(y))
    assert jnp.allclose(out_y, fn(y), atol=1e-6, rtol=1e-6)

    print("KERNEL_OK")
</pallas_src>

<mosaic_0001>
module attributes {stable_mosaic.version = 11 : i64} {
  func.func @kernel(%arg0: i32, %arg1: memref<1x2048xf32, #tpu.memory_space<vmem>>, %arg2: memref<1x2048xf32, #tpu.memory_space<vmem>>) attributes {dimension_semantics = [#tpu.dimension_semantics<parallel>], iteration_bounds = array<i64: 1>, scalar_prefetch = 0 : i64, scratch_operands = 0 : i64, tpu.core_type = #tpu.core_type<tc>, window_params = [{transform_indices = @transform_0, window_bounds = array<i64: 1, 2048>}, {transform_indices = @transform_1, window_bounds = array<i64: 1, 2048>}]} {
    %c0 = arith.constant 0 : index
    %c0_0 = arith.constant 0 : index
    %0 = vector.load %arg1[%c0, %c0_0] : memref<1x2048xf32, #tpu.memory_space<vmem>>, vector<1x2048xf32>
    %cst = arith.constant 0.000000e+00 : f32
    %1 = vector.broadcast %cst : f32 to vector<1x2048xf32>
    %2 = arith.maximumf %0, %1 : vector<1x2048xf32>
    %cst_1 = arith.constant 2.000000e+00 : f32
    %3 = vector.broadcast %cst_1 : f32 to vector<1x2048xf32>
    %4 = arith.mulf %2, %3 : vector<1x2048xf32>
    %cst_2 = arith.constant 1.000000e+00 : f32
    %5 = vector.broadcast %cst_2 : f32 to vector<1x2048xf32>
    %6 = arith.addf %4, %5 : vector<1x2048xf32>
    %c0_3 = arith.constant 0 : index
    %c0_4 = arith.constant 0 : index
    %7 = vector.load %arg2[%c0_3, %c0_4] : memref<1x2048xf32, #tpu.memory_space<vmem>>, vector<1x2048xf32>
    tpu.vector_store %arg2[%c0_3, %c0_4], %6 {strides = array<i32>} : memref<1x2048xf32, #tpu.memory_space<vmem>>, vector<1x2048xf32>,
    return
  }
  func.func @transform_0(%arg0: i32) -> (i32, i32) {
    %c0_i32 = arith.constant 0 : i32
    %c0_i32_0 = arith.constant 0 : i32
    return %arg0, %c0_i32 : i32, i32
  }
  func.func @transform_1(%arg0: i32) -> (i32, i32) {
    %c0_i32 = arith.constant 0 : i32
    %c0_i32_0 = arith.constant 0 : i32
    return %arg0, %c0_i32 : i32, i32
  }
}

</mosaic_0001>

<llo_original>
// kernel: apply.1
$region0: #{apply.1}
  #allocation0 [shape = 'u32[]', space=smem, size = 0x4, offset = 0x4, fixed_abs, tag = 'smem constant byte address 0x4 - core index']
  #allocation1 [shape = 'u32[144,128]{1,0:T(1,128)}', space=vmem, size = 0x12000, scoped, tag = 'internal scratch']
  %s0 = inlined_call_operand.vmem [shape: f32[1,2048], index: 0, kind: input, shape index: {}]
  %s1 = inlined_call_operand.vmem [shape: f32[1,2048], index: 1, kind: output, shape index: {}]
  %s2 = sld [smem:[#allocation0]]
  $region14: #{apply.1} parent=0
    _
  %s4 = ssub.s32 1, %s2
  %s5 = scalar_select 0, %s4, %s2
  // Predicated region
  $region2: #{apply.1} parent=0 // pred_check
    _
  $region3: #{apply.1} parent=0 // pred_check_branch
    %7 = sbr.rel (0) target = $region5
  $region4: #{apply.1} parent=0 // pred_region
    _
  $region5: #{apply.1} parent=0 // pred_fallthru
    _
  %v8 = vld [vmem:[%s0] sm:$0xff]
  %v9 = vld [vmem:[%s0 + $0x8] sm:$0xff]
  %v10 = vmax.f32 %v8, 0.0
  %v11 = vmax.f32 %v9, 0.0
  %v12 = vmul.f32 %v10, 2.0
  %v13 = vmul.f32 %v11, 2.0
  %v14 = vadd.f32 %v12, 1.0
  %v15 = vadd.f32 %v13, 1.0
  %16 = vst [vmem:[%s1] sm:$0xff] %v14
  %17 = vst [vmem:[%s1 + $0x8] sm:$0xff] %v15
  // Predicated region
  $region6: #{apply.1} parent=0 // pred_check
    _
  $region7: #{apply.1} parent=0 // pred_check_branch
    %19 = sbr.rel (0) target = $region9
  $region8: #{apply.1} parent=0 // pred_region
    _
  $region9: #{apply.1} parent=0 // pred_fallthru
    _
  // Predicated region
  $region10: #{apply.1} parent=0 // pred_check
    _
  $region11: #{apply.1} parent=0 // pred_check_branch
    %21 = sbr.rel (0) target = $region13
  $region12: #{apply.1} parent=0 // pred_region
    _
  $region13: #{apply.1} parent=0 // pred_fallthru
    _

</llo_original>
